<compile_context>
chip_gen: v7x
topology: tpu7x:2x2x1
jax: 0.10.0
libtpu: 0.0.40
codegen_flags: <defaults>
</compile_context>

<pallas_src>
import warnings

import jax
import jax.numpy as jnp
import numpy as np
from jax.experimental import pallas as pl
from jax.experimental.pallas import tpu as pltpu


# ---------------------------------------------------------------------------
# Tiling helpers
# ---------------------------------------------------------------------------
_LANE = 128
_TM_CANDIDATES = (512, 256, 128, 64, 32, 16)    # >= 16: bf16 sublane packing
_TNK_CANDIDATES = (2048, 1024, 512, 256, 128)   # lane-dense, prefer 256-aligned
_VMEM_BUDGET = 40 * 1024 * 1024                 # safe on v7x (64 MiB physical)


def _round_up(x, m):
    return ((x + m - 1) // m) * m


def _pick_tile(dim, candidates):
    """Largest candidate that evenly divides `dim` (last candidate is the floor)."""
    for t in candidates:
        if dim % t == 0:
            return t
    return candidates[-1]


def _vmem_bytes(tm, tn, tk, out_bytes, use_scratch):
    """Double-buffered working set for one grid step."""
    x_b = 2 * tm * tk * 2            # bf16 x tile
    w_b = 2 * tk * tn * 2            # bf16 W.T tile
    b_b = 2 * tn * 4                 # f32 bias tile
    o_b = 2 * tm * tn * out_bytes    # output tile
    a_b = tm * tn * 4 if use_scratch else 0
    return x_b + w_b + b_b + o_b + a_b


# ---------------------------------------------------------------------------
# Kernel: one (tm, tn) output tile; the last grid axis walks ONLY the non-zero
# (tk, tn) weight blocks of column block j (block-sparse schedule in SMEM).
# ---------------------------------------------------------------------------
def _make_kernel(use_scratch):
    if use_scratch:
        # Needed when out_dtype != f32 (e.g. bf16 output): accumulate in f32
        # scratch, cast once in the epilogue.
        def kernel(ids_ref, cnt_ref, x_ref, wt_ref, b_ref, o_ref, acc_ref):
            j = pl.program_id(1)
            s = pl.program_id(2)

            @pl.when(s == 0)
            def _():
                acc_ref[...] = jnp.broadcast_to(b_ref[...], acc_ref.shape)

            @pl.when(s < cnt_ref[j])
            def _():
                acc_ref[...] += jnp.dot(x_ref[...], wt_ref[...],
                                        preferred_element_type=jnp.float32)

            @pl.when(s == pl.num_programs(2) - 1)
            def _():
                o_ref[...] = acc_ref[...].astype(o_ref.dtype)
    else:
        # f32 output: the output block index is k-invariant, so accumulate
        # directly into the resident o_ref -> no scratch, no epilogue copy.
        def kernel(ids_ref, cnt_ref, x_ref, wt_ref, b_ref, o_ref):
            j = pl.program_id(1)
            s = pl.program_id(2)

            @pl.when(s == 0)
            def _():
                o_ref[...] = jnp.broadcast_to(b_ref[...], o_ref.shape)

            @pl.when(s < cnt_ref[j])
            def _():
                o_ref[...] += jnp.dot(x_ref[...], wt_ref[...],
                                      preferred_element_type=jnp.float32)
    return kernel


# ---------------------------------------------------------------------------
# Operand / schedule preparation (runs once at __init__/build time).
# ---------------------------------------------------------------------------
def _prepare_operands(weight_nk, bias_n, mask_nk=None):
    """Pre-transpose/pad/cast the weight and bias and build the block-sparse
    schedule (per-column-block non-zero K-block ids + counts).

    weight_nk: (N, K) f32 PyTorch nn.Linear layout.  mask_nk is (N, K) or None
    (dense fallback: every block is scheduled).
    """
    N, K = int(weight_nk.shape[0]), int(weight_nk.shape[1])
    Np = _round_up(N, _LANE)
    Kp = _round_up(K, _LANE)

    tn = _pick_tile(Np, _TNK_CANDIDATES)
    tk = _pick_tile(Kp, _TNK_CANDIDATES)

    # v7x megacore: keep >= 2 blocks along the "parallel" N axis when possible,
    # otherwise the second TensorCore idles for small-M shapes.
    if Np // tn == 1 and Np >= 2 * _LANE:
        for c in _TNK_CANDIDATES:
            if c <= Np // 2 and Np % c == 0:
                tn = c
                break

    # Shrink tk (then tn) until the worst-case working set fits the budget
    # (computed with the largest tm we might ever pick and a f32 output).
    while _vmem_bytes(_TM_CANDIDATES[0], tn, tk, 4, True) > _VMEM_BUDGET:
        if tk > _LANE and tk >= tn:
            tk //= 2
        elif tn > _LANE:
            tn //= 2
        else:
            break

    # Weight: fold mask (if any), transpose to (K, N), cast bf16, pad lane-dense.
    w = jnp.asarray(weight_nk, jnp.float32)
    if mask_nk is not None:
        w = w * jnp.asarray(mask_nk, jnp.float32)
    wt = w.T.astype(jnp.bfloat16)                           # (K, N)
    wt = jnp.pad(wt, ((0, Kp - K), (0, Np - N)))            # (Kp, Np)
    b2 = jnp.asarray(bias_n, jnp.float32).reshape(1, N)
    b2 = jnp.pad(b2, ((0, 0), (0, Np - N)))                 # (1, Np)

    # Block-sparse schedule on the padded (Kp, Np) layout.
    nkb, njb = Kp // tk, Np // tn
    if mask_nk is None:
        occ = np.ones((nkb, njb), dtype=bool)
    else:
        m = np.zeros((Kp, Np), dtype=bool)
        m[:K, :N] = np.asarray(mask_nk).T != 0
        occ = m.reshape(nkb, tk, njb, tn).any(axis=(1, 3))  # (nkb, njb)

    counts = occ.sum(axis=0).astype(np.int32)               # (njb,)
    maxc = max(int(counts.max()) if counts.size else 0, 1)
    ids = np.zeros((njb, maxc), dtype=np.int32)
    for j in range(njb):
        nz = np.nonzero(occ[:, j])[0].astype(np.int32)
        if nz.size:
            ids[j, :nz.size] = nz
            ids[j, nz.size:] = nz[-1]   # repeat last id -> unchanged block, DMA skipped

    return dict(
        wt=wt, bias=b2, tn=tn, tk=tk, maxc=maxc,
        ids=jnp.asarray(ids.reshape(-1)),        # flattened 1D -> cheap SMEM layout
        counts=jnp.asarray(counts),
        nnz_blocks=int(counts.sum()),
        n_out=N,
    )


# ---------------------------------------------------------------------------
# Pallas call
# ---------------------------------------------------------------------------
def _linear_pallas(xb, ops, out_dtype):
    wt_p, bias_p = ops["wt"], ops["bias"]
    tn, tk, maxc = ops["tn"], ops["tk"], ops["maxc"]
    ids, counts = ops["ids"], ops["counts"]

    Mp, Kp = xb.shape
    Kp2, Np = wt_p.shape
    assert Kp == Kp2 and Np % tn == 0 and Kp % tk == 0

    tm = _pick_tile(Mp, _TM_CANDIDATES)
    out_bytes = jnp.dtype(out_dtype).itemsize
    use_scratch = jnp.dtype(out_dtype) != jnp.dtype(jnp.float32)

    grid = (Mp // tm, Np // tn, maxc)

    # index_maps receive (grid indices..., *scalar_prefetch_refs).
    def x_map(i, j, s, ids_ref, cnt_ref):
        return (i, ids_ref[j * maxc + s])

    def w_map(i, j, s, ids_ref, cnt_ref):
        return (ids_ref[j * maxc + s], j)

    def b_map(i, j, s, ids_ref, cnt_ref):
        return (0, j)

    def o_map(i, j, s, ids_ref, cnt_ref):
        return (i, j)

    scratch = [pltpu.VMEM((tm, tn), jnp.float32)] if use_scratch else []

    nnz = max(ops["nnz_blocks"], 1)
    cost = pl.CostEstimate(
        flops=2 * Mp * tk * tn * nnz,
        transcendentals=0,
        bytes_accessed=(xb.size * 2 + nnz * tk * tn * 2
                        + bias_p.size * 4 + Mp * Np * out_bytes),
    )

    need = _vmem_bytes(tm, tn, tk, out_bytes, use_scratch)
    vmem_limit = int(min(max(2 * need, 16 * 1024 * 1024), 48 * 1024 * 1024))

    # TODO(synk): for very small M with huge K*N, a deeper weight pipeline
    # (pipeline_mode=pl.Buffered(3)) and an int8(v5e/v6e)/fp8(v7x) weight path
    # would further cut exposed weight DMA; not needed at these shapes.
    return pl.pallas_call(
        _make_kernel(use_scratch),
        out_shape=jax.ShapeDtypeStruct((Mp, Np), out_dtype),
        grid_spec=pltpu.PrefetchScalarGridSpec(
            num_scalar_prefetch=2,
            grid=grid,
            in_specs=[
                pl.BlockSpec((tm, tk), x_map),    # x   (bf16), skips zero K blocks
                pl.BlockSpec((tk, tn), w_map),    # W.T (bf16), only non-zero blocks
                pl.BlockSpec((1, tn), b_map),     # bias (f32), k-invariant block
            ],
            out_specs=pl.BlockSpec((tm, tn), o_map),
            scratch_shapes=scratch,
        ),
        compiler_params=pltpu.CompilerParams(
            dimension_semantics=("parallel", "parallel", "arbitrary"),
            vmem_limit_bytes=vmem_limit,
        ),
        cost_estimate=cost,
    )(ids, counts, xb, wt_p, bias_p)


def _linear_forward(x, ops, out_dtype=None):
    """Cast/pad x only if needed, run the kernel, slice/reshape back."""
    out_dtype = x.dtype if out_dtype is None else out_dtype
    n_out = ops["n_out"]
    lead = x.shape[:-1]
    K = x.shape[-1]
    x2 = x.reshape(-1, K) if x.ndim != 2 else x
    M = x2.shape[0]

    Kp, Np = ops["wt"].shape
    Mp = _round_up(max(M, 16), 16)     # bf16 packs 16 rows / vreg

    xb = x2 if x2.dtype == jnp.bfloat16 else x2.astype(jnp.bfloat16)
    if Mp != M or Kp != K:
        xb = jnp.pad(xb, ((0, Mp - M), (0, Kp - K)))   # zero pad: exact for matmul

    out = _linear_pallas(xb, ops, out_dtype)
    if Mp != M or Np != n_out:
        out = out[:M, :n_out]
    return out.reshape(*lead, n_out) if x.ndim != 2 else out


# ---------------------------------------------------------------------------
# Operator wrapper (JAX analogue of OperatorBase wrapping nn.Linear + mask).
# ---------------------------------------------------------------------------
class SparseLinearOperator:
    """forward(x):
      - if `ready` (build() was called): sparse forward through the
        block-sparse Pallas kernel (zero weight blocks never DMA'd/multiplied).
      - else: warn and run the dense (unmasked) forward of the raw module,
        through the same kernel with a full block schedule.
    """

    def __init__(self, weight, bias, mask, out_dtype=None):
        self.weight = jnp.asarray(weight, jnp.float32)   # (N, K) PyTorch layout
        self.bias = jnp.asarray(bias, jnp.float32)       # (N,)
        self._mask = jnp.asarray(mask, jnp.float32)      # (N, K)
        self._out_dtype = out_dtype                      # None -> x.dtype; bf16 allowed
        self.ready = False

        # Dense-fallback operands prepared ONCE (transposed, padded, bf16,
        # full block schedule).
        self._dense_ops = _prepare_operands(self.weight, self.bias, mask_nk=None)
        self._sparse_ops = None
        # TODO(synk): OperatorBase's search-space / tuner / CUDA-template JIT
        # machinery has no Pallas equivalent; build() compiles the block-sparse
        # schedule and flips `ready`.

    def build(self, params=None, sample_inputs=None, jit=True):
        self._sparse_ops = _prepare_operands(self.weight, self.bias, mask_nk=self._mask)
        self.ready = True

    def _sparse_forward(self, x):
        return _linear_forward(x, self._sparse_ops, self._out_dtype)

    def _dense_forward(self, x):
        return _linear_forward(x, self._dense_ops, self._out_dtype)

    def forward(self, x):
        if self.ready:
            return self._sparse_forward(x)
        warnings.warn(
            "the sparse module is not compiled, using the dense module to forward"
        )
        return self._dense_forward(x)

    __call__ = forward


# ---------------------------------------------------------------------------
# Demo / self-test
# ---------------------------------------------------------------------------
if __name__ == "__main__":
    key = jax.random.PRNGKey(0)

    # --- Test 1: small nn.Linear shapes (M=8, K=32, N=48), random mask. ---
    M, K, N = 8, 32, 48
    k1, k2, k3, k4, key = jax.random.split(key, 5)
    x = jax.random.normal(k1, (M, K), dtype=jnp.float32)
    weight = jax.random.normal(k2, (N, K), dtype=jnp.float32) * 0.1
    bias = jax.random.normal(k3, (N,), dtype=jnp.float32)
    mask = (jax.random.uniform(k4, (N, K)) > 0.5).astype(jnp.float32)

    op = SparseLinearOperator(weight, bias, mask)
    TOL = dict(rtol=3e-2, atol=3e-2)   # bf16 operands, f32 accumulation

    # Not built yet -> dense fallback path (warns).
    with warnings.catch_warnings():
        warnings.simplefilter("ignore")
        y_dense = jax.block_until_ready(op(x))
    np.testing.assert_allclose(np.asarray(y_dense),
                               np.asarray(x @ weight.T + bias), **TOL)

    # Built -> sparse (masked) forward path.
    op.build()
    y_sparse = jax.block_until_ready(op(x))
    np.testing.assert_allclose(np.asarray(y_sparse),
                               np.asarray(x @ (weight * mask).T + bias), **TOL)

    # --- Test 2: block-structured sparsity (whole output column block zero)
    #     exercises the count==0 ragged-tail / bias-only path and the
    #     megacore N-split (Np=256 -> 2 column blocks of tn=128).           ---
    M2, K2, N2 = 16, 256, 256
    k1, k2, k3, k4, key = jax.random.split(key, 5)
    x2 = jax.random.normal(k1, (M2, K2), dtype=jnp.float32)
    w2 = jax.random.normal(k2, (N2, K2), dtype=jnp.float32) * 0.1
    b2 = jax.random.normal(k3, (N2,), dtype=jnp.float32)
    m2 = (jax.random.uniform(k4, (N2, K2)) > 0.3).astype(jnp.float32)
    m2 = m2.at[128:, :].set(0.0)   # second output column block entirely masked out

    op2 = SparseLinearOperator(w2, b2, m2)
    op2.build()
    y2 = jax.block_until_ready(op2(x2))
    np.testing.assert_allclose(np.asarray(y2),
                               np.asarray(x2 @ (w2 * m2).T + b2), **TOL)

    print("KERNEL_OK")
</pallas_src>

<mosaic_0001>
module attributes {stable_mosaic.version = 11 : i64} {
  func.func @kernel(%arg0: i32, %arg1: i32, %arg2: i32, %arg3: memref<1xi32, #tpu.memory_space<smem>>, %arg4: memref<1xi32, #tpu.memory_space<smem>>, %arg5: memref<16x128xbf16, #tpu.memory_space<vmem>>, %arg6: memref<128x128xbf16, #tpu.memory_space<vmem>>, %arg7: memref<1x128xf32, #tpu.memory_space<vmem>>, %arg8: memref<16x128xf32, #tpu.memory_space<vmem>>) attributes {dimension_semantics = [#tpu.dimension_semantics<parallel>, #tpu.dimension_semantics<parallel>, #tpu.dimension_semantics<arbitrary>], iteration_bounds = array<i64: 1, 1, 1>, scalar_prefetch = 2 : i64, scratch_operands = 0 : i64, tpu.core_type = #tpu.core_type<tc>, window_params = [{transform_indices = @transform_0, window_bounds = array<i64: 16, 128>}, {transform_indices = @transform_1, window_bounds = array<i64: 128, 128>}, {transform_indices = @transform_2, window_bounds = array<i64: 1, 128>}, {transform_indices = @transform_3, window_bounds = array<i64: 16, 128>}]} {
    %c0_i32 = arith.constant 0 : i32
    %0 = arith.cmpi eq, %arg2, %c0_i32 : i32
    %1 = arith.extui %0 : i1 to i32
    %c0_i32_0 = arith.constant 0 : i32
    %2 = arith.cmpi ne, %1, %c0_i32_0 : i32
    scf.if %2 {
      %c0 = arith.constant 0 : index
      %c0_2 = arith.constant 0 : index
      %8 = vector.load %arg7[%c0, %c0_2] : memref<1x128xf32, #tpu.memory_space<vmem>>, vector<1x128xf32>
      %9 = vector.shape_cast %8 : vector<1x128xf32> to vector<1x128xf32>
      %10 = vector.broadcast %9 : vector<1x128xf32> to vector<16x128xf32>
      %c0_3 = arith.constant 0 : index
      %c0_4 = arith.constant 0 : index
      %11 = vector.load %arg8[%c0_3, %c0_4] : memref<16x128xf32, #tpu.memory_space<vmem>>, vector<16x128xf32>
      tpu.vector_store %arg8[%c0_3, %c0_4], %10 {strides = array<i32>} : memref<16x128xf32, #tpu.memory_space<vmem>>, vector<16x128xf32>,
    } else {
    }
    %3 = arith.index_cast %arg1 : i32 to index
    %4 = memref.load %arg4[%3] : memref<1xi32, #tpu.memory_space<smem>>
    %5 = arith.cmpi slt, %arg2, %4 : i32
    %6 = arith.extui %5 : i1 to i32
    %c0_i32_1 = arith.constant 0 : i32
    %7 = arith.cmpi ne, %6, %c0_i32_1 : i32
    scf.if %7 {
      %c0 = arith.constant 0 : index
      %c0_2 = arith.constant 0 : index
      %8 = vector.load %arg8[%c0, %c0_2] : memref<16x128xf32, #tpu.memory_space<vmem>>, vector<16x128xf32>
      %c0_3 = arith.constant 0 : index
      %c0_4 = arith.constant 0 : index
      %9 = vector.load %arg5[%c0_3, %c0_4] : memref<16x128xbf16, #tpu.memory_space<vmem>>, vector<16x128xbf16>
      %c0_5 = arith.constant 0 : index
      %c0_6 = arith.constant 0 : index
      %10 = vector.load %arg6[%c0_5, %c0_6] : memref<128x128xbf16, #tpu.memory_space<vmem>>, vector<128x128xbf16>
      %cst = arith.constant dense<0.000000e+00> : vector<16x128xf32>
      %11 = tpu.matmul %9, %10, %cst {dimension_numbers = #tpu.dot_dimension_numbers<[1], [0], [0], [1], [0, 0, 1, 1], [], []>} : vector<16x128xbf16>, vector<128x128xbf16>, vector<16x128xf32> -> vector<16x128xf32>
      %12 = arith.addf %8, %11 : vector<16x128xf32>
      %c0_7 = arith.constant 0 : index
      %c0_8 = arith.constant 0 : index
      %13 = vector.load %arg8[%c0_7, %c0_8] : memref<16x128xf32, #tpu.memory_space<vmem>>, vector<16x128xf32>
      tpu.vector_store %arg8[%c0_7, %c0_8], %12 {strides = array<i32>} : memref<16x128xf32, #tpu.memory_space<vmem>>, vector<16x128xf32>,
    } else {
    }
    return
  }
  func.func @transform_0(%arg0: i32, %arg1: i32, %arg2: i32, %arg3: memref<1xi32, #tpu.memory_space<smem>>, %arg4: memref<1xi32, #tpu.memory_space<smem>>) -> (i32, i32) {
    %c1_i32 = arith.constant 1 : i32
    %0 = arith.muli %arg1, %c1_i32 : i32
    %1 = arith.addi %0, %arg2 : i32
    %2 = arith.index_cast %1 : i32 to index
    %3 = memref.load %arg3[%2] : memref<1xi32, #tpu.memory_space<smem>>
    %c0_i32 = arith.constant 0 : i32
    return %arg0, %3 : i32, i32
  }
  func.func @transform_1(%arg0: i32, %arg1: i32, %arg2: i32, %arg3: memref<1xi32, #tpu.memory_space<smem>>, %arg4: memref<1xi32, #tpu.memory_space<smem>>) -> (i32, i32) {
    %c1_i32 = arith.constant 1 : i32
    %0 = arith.muli %arg1, %c1_i32 : i32
    %1 = arith.addi %0, %arg2 : i32
    %2 = arith.index_cast %1 : i32 to index
    %3 = memref.load %arg3[%2] : memref<1xi32, #tpu.memory_space<smem>>
    %c0_i32 = arith.constant 0 : i32
    return %3, %arg1 : i32, i32
  }
  func.func @transform_2(%arg0: i32, %arg1: i32, %arg2: i32, %arg3: memref<1xi32, #tpu.memory_space<smem>>, %arg4: memref<1xi32, #tpu.memory_space<smem>>) -> (i32, i32) {
    %c0_i32 = arith.constant 0 : i32
    %c0_i32_0 = arith.constant 0 : i32
    return %c0_i32, %arg1 : i32, i32
  }
  func.func @transform_3(%arg0: i32, %arg1: i32, %arg2: i32, %arg3: memref<1xi32, #tpu.memory_space<smem>>, %arg4: memref<1xi32, #tpu.memory_space<smem>>) -> (i32, i32) {
    %c0_i32 = arith.constant 0 : i32
    return %arg0, %arg1 : i32, i32
  }
}

</mosaic_0001>

<llo_original>
// kernel: tpu_custom_call.1
$region0: #{tpu_custom_call.1}
  #allocation0 [shape = 'u32[]', space=smem, size = 0x4, offset = 0x4, fixed_abs, tag = 'smem constant byte address 0x4 - core index']
  #allocation1 [shape = 'u32[144,128]{1,0:T(1,128)}', space=vmem, size = 0x12000, scoped, tag = 'internal scratch']
  #allocation2 [shape = 's32[1]{0}', space=sflag, size = 0x4, scoped, tag = 'scoped memory for tpu_custom_call.1']
  #allocation3 [shape = 's32[1]{0:T(128)S(6)}', space=smem, size = 0x200, scoped, tag = 'prefetched SMEM operand 0']
  #allocation4 [shape = 's32[1]{0:T(128)S(6)}', space=smem, size = 0x200, scoped, tag = 'prefetched SMEM operand 1']
  %s0 = inlined_call_operand.<no memory space> [shape: s32[1], index: 0, kind: input, shape index: {}]
  %s1 = inlined_call_operand.<no memory space> [shape: s32[1], index: 1, kind: input, shape index: {}]
  %s2 = inlined_call_operand.hbm [shape: bf16[16,128], index: 2, kind: input, shape index: {}]
  %s3 = inlined_call_operand.hbm [shape: bf16[128,128], index: 3, kind: input, shape index: {}]
  %s4 = inlined_call_operand.vmem [shape: f32[1,128], index: 4, kind: input, shape index: {}]
  %s5 = inlined_call_operand.hbm [shape: f32[16,128], index: 5, kind: output, shape index: {}]
  %s6 = sld [smem:[#allocation0]]
  $region38: #{tpu_custom_call.1} parent=0
    _
  %s8 = ssub.s32 1, %s6
  %s9 = scalar_select 0, %s8, %s6
  %10 = sst [smem:[#allocation3]] %s0
  %11 = sst [smem:[#allocation4]] %s1
  $region1: #{tpu_custom_call.1} parent=0
    #allocation5 [shape = 'u8[4096]{0}', space=vmem, size = 0x1000, scoped, tag = 'input window, operand 2, single buffered']
    #allocation6 [shape = 's32[1]{0}', space=sflag, size = 0x4, scoped, tag = 'scoped memory for tpu_custom_call.1']
    #allocation7 [shape = 's32[1]{0}', space=sflag, size = 0x4, scoped, tag = 'scoped memory for tpu_custom_call.1']
    #allocation8 [shape = 'u8[32768]{0}', space=vmem, size = 0x8000, scoped, tag = 'input window, operand 3, single buffered']
    #allocation9 [shape = 's32[1]{0}', space=sflag, size = 0x4, scoped, tag = 'scoped memory for tpu_custom_call.1']
    #allocation10 [shape = 'u8[8192]{0}', space=vmem, size = 0x2000, scoped, tag = 'output window, operand 0, single buffered']
    %12 = vsyncpa [#allocation6], 0
    %13 = vsyncpa [#allocation9], 0
    %14 = vsyncpa [#allocation7], 0
    // Predicated region
    $region2: #{tpu_custom_call.1} parent=1 // pred_check
      _
    $region3: #{tpu_custom_call.1} parent=1 // pred_check_branch
      %16 = sbr.rel (0) target = $region5
    $region4: #{tpu_custom_call.1} parent=1 // pred_region
      %s17 = sadd.s32 0, 0
      %s18 = sld [smem:[#allocation3 + %s17]]
      %s20 = ssub.s32 128, 128
      %21 = vsyncadd [#allocation6], %s20
      %s22 = smul.addr %s18, 64
      %s23 = scalar_lea.hbm %s2, %s22
      %s24 = sshll.u32 [#allocation5], 4
      %s25 = int_to_ptr.vmem [resolvable:$true] %s24
      %30 = dma.hbm_to_vmem [thread:$0]  %s23, 128, %s25, [#allocation6], 64, 64, 4
    $region5: #{tpu_custom_call.1} parent=1 // pred_fallthru
      _
    // Predicated region
    $region6: #{tpu_custom_call.1} parent=1 // pred_check
      _
    $region7: #{tpu_custom_call.1} parent=1 // pred_check_branch
      %32 = sbr.rel (0) target = $region9
    $region8: #{tpu_custom_call.1} parent=1 // pred_region
      %s33 = sadd.s32 0, 0
      %s34 = sld [smem:[#allocation3 + %s33]]
      %s35 = smul.u32 16, %s34
      %s37 = ssub.s32 1024, 1024
      %38 = vsyncadd [#allocation9], %s37
      %s39 = smul.addr %s35, 64
      %s40 = scalar_lea.hbm %s3, %s39
      %s41 = sshll.u32 [#allocation8], 4
      %s42 = int_to_ptr.vmem [resolvable:$true] %s41
      %47 = dma.hbm_to_vmem [thread:$0]  %s40, 1024, %s42, [#allocation9], 64, 64, 4
    $region9: #{tpu_custom_call.1} parent=1 // pred_fallthru
      _
    // Predicated region
    $region10: #{tpu_custom_call.1} parent=1 // pred_check
      _
    $region11: #{tpu_custom_call.1} parent=1 // pred_check_branch
      %49 = sbr.rel (0) target = $region13
    $region12: #{tpu_custom_call.1} parent=1 // pred_region
      _
    $region13: #{tpu_custom_call.1} parent=1 // pred_fallthru
      _
    // Predicated region
    $region14: #{tpu_custom_call.1} parent=1 // pred_check
      _
    $region15: #{tpu_custom_call.1} parent=1 // pred_check_branch
      %51 = sbr.rel (0) target = $region17
    $region16: #{tpu_custom_call.1} parent=1 // pred_region
      %52 = dma.done [#allocation6], 128
    $region17: #{tpu_custom_call.1} parent=1 // pred_fallthru
      _
    // Predicated region
    $region18: #{tpu_custom_call.1} parent=1 // pred_check
      _
    $region19: #{tpu_custom_call.1} parent=1 // pred_check_branch
      %54 = sbr.rel (0) target = $region21
    $region20: #{tpu_custom_call.1} parent=1 // pred_region
      %55 = dma.done [#allocation9], 1024
    $region21: #{tpu_custom_call.1} parent=1 // pred_fallthru
      _
    %s56 = sadd.s32 0, 0
    %s57 = sld [smem:[#allocation3 + %s56]]
    %s58 = sadd.s32 0, 0
    %s59 = sld [smem:[#allocation3 + %s58]]
    %s60 = smul.u32 16, %s59
    %p62 = scmp.eq.s32.totalorder 0, 0
    // Predicated region
    $region22: #{tpu_custom_call.1} parent=1 // pred_check
      %p63 = pneg %p62
    $region23: #{tpu_custom_call.1} parent=1 // pred_check_branch
      %65 = sbr.rel (%p63) target = $region25
    $region24: #{tpu_custom_call.1} parent=1 // pred_region
      %v66 = vld [vmem:[%s4] sm:$0x1]
      %v68 = vlaneseq
      %v69 = vshrl.u32 %v68, 7
      %v70 = vsub.s32 0, %v69
      %v71 = vrot.slane %v66, %v70
      %73 = vst [vmem:[#allocation10] sm:$0xff] %v71
      %74 = vst [vmem:[#allocation10 + $0x8] sm:$0xff] %v71
    $region25: #{tpu_custom_call.1} parent=1 // pred_fallthru
      _
    %s75 = sld [smem:[#allocation4]]
    %p76 = scmp.lt.s32.totalorder 0, %s75
    // Predicated region
    $region26: #{tpu_custom_call.1} parent=1 // pred_check
      %p77 = pneg %p76
    $region27: #{tpu_custom_call.1} parent=1 // pred_check_branch
      %79 = sbr.rel (%p77) target = $region29
    $region28: #{tpu_custom_call.1} parent=1 // pred_region
      %v80 = vld [vmem:[#allocation10] sm:$0xff]
      %v81 = vld [vmem:[#allocation10 + $0x8] sm:$0xff]
      %v82 = vld [vmem:[#allocation5] sm:$0xf]
      %v83 = vld [vmem:[#allocation5 + $0x4] sm:$0xf]
      %v84 = vld [vmem:[#allocation8] sm:$0xf]
      %v85 = vld [vmem:[#allocation8 + $0x4] sm:$0xf]
      %v86 = vld [vmem:[#allocation8 + $0x8] sm:$0xf]
      %v87 = vld [vmem:[#allocation8 + $0xc] sm:$0xf]
      %v88 = vld [vmem:[#allocation8 + $0x10] sm:$0xf]
      %v89 = vld [vmem:[#allocation8 + $0x14] sm:$0xf]
      %v90 = vld [vmem:[#allocation8 + $0x18] sm:$0xf]
      %v91 = vld [vmem:[#allocation8 + $0x1c] sm:$0xf]
      %v92 = vld [vmem:[#allocation8 + $0x20] sm:$0xf]
      %v93 = vld [vmem:[#allocation8 + $0x24] sm:$0xf]
      %v94 = vld [vmem:[#allocation8 + $0x28] sm:$0xf]
      %v95 = vld [vmem:[#allocation8 + $0x2c] sm:$0xf]
      %v96 = vld [vmem:[#allocation8 + $0x30] sm:$0xf]
      %v97 = vld [vmem:[#allocation8 + $0x34] sm:$0xf]
      %v98 = vld [vmem:[#allocation8 + $0x38] sm:$0xf]
      %v99 = vld [vmem:[#allocation8 + $0x3c] sm:$0xf]
      %v102 = vunpack.c.l.b16 %v82
      %v103 = vunpack.c.l.b16 %v83
      %v104 = vpack.c.b16 %v103, %v102
      %v122 = vunpack.c.l.b16 %v84
      %v123 = vunpack.c.l.b16 %v85
      %v124 = vunpack.c.l.b16 %v86
      %v125 = vunpack.c.l.b16 %v87
      %v126 = vunpack.c.l.b16 %v88
      %v127 = vunpack.c.l.b16 %v89
      %v128 = vunpack.c.l.b16 %v90
      %v129 = vunpack.c.l.b16 %v91
      %v130 = vunpack.c.l.b16 %v92
      %v131 = vunpack.c.l.b16 %v93
      %v132 = vunpack.c.l.b16 %v94
      %v133 = vunpack.c.l.b16 %v95
      %v134 = vunpack.c.l.b16 %v96
      %v135 = vunpack.c.l.b16 %v97
      %v136 = vunpack.c.l.b16 %v98
      %v137 = vunpack.c.l.b16 %v99
      %v138 = vpack.c.b16 %v123, %v122
      %v139 = vpack.c.b16 %v125, %v124
      %v140 = vpack.c.b16 %v127, %v126
      %v141 = vpack.c.b16 %v129, %v128
      %v142 = vpack.c.b16 %v131, %v130
      %v143 = vpack.c.b16 %v133, %v132
      %v144 = vpack.c.b16 %v135, %v134
      %v145 = vpack.c.b16 %v137, %v136
      %154 = vmatprep.subr.bf16.mxu0 0
      %155 = vmatpush1.bf16.msra.mxu0 %v138
      %156 = vmatprep.subr.bf16.mxu0 0
      %157 = vmatpush1.bf16.msra.mxu0 %v139
      %158 = vmatprep.subr.bf16.mxu0 0
      %159 = vmatpush1.bf16.msra.mxu0 %v140
      %160 = vmatprep.subr.bf16.mxu0 0
      %161 = vmatpush1.bf16.msra.mxu0 %v141
      %162 = vmatprep.subr.bf16.mxu0 0
      %163 = vmatpush1.bf16.msra.mxu0 %v142
      %164 = vmatprep.subr.bf16.mxu0 0
      %165 = vmatpush1.bf16.msra.mxu0 %v143
      %166 = vmatprep.subr.bf16.mxu0 0
      %167 = vmatpush1.bf16.msra.mxu0 %v144
      %168 = vmatprep.subr.bf16.mxu0 0
      %169 = vmatpush1.bf16.msra.mxu0 %v145
      %170 = vmatprep.subr.bf16.mxu0 0
      %171 = vmatpush1.bf16.msra.mxu0 0
      %172 = vmatprep.subr.bf16.mxu0 0
      %173 = vmatpush1.bf16.msra.mxu0 0
      %174 = vmatprep.subr.bf16.mxu0 0
      %175 = vmatpush1.bf16.msra.mxu0 0
      %176 = vmatprep.subr.bf16.mxu0 0
      %177 = vmatpush1.bf16.msra.mxu0 0
      %178 = vmatprep.subr.bf16.mxu0 0
      %179 = vmatpush1.bf16.msra.mxu0 0
      %180 = vmatprep.subr.bf16.mxu0 0
      %181 = vmatpush1.bf16.msra.mxu0 0
      %182 = vmatprep.subr.bf16.mxu0 0
      %183 = vmatpush1.bf16.msra.mxu0 0
      %184 = vmatprep.subr.bf16.mxu0 0
      %185 = vmatpush1.bf16.msra.mxu0 0
      %186 = vmatprep.mubr.bf16.mxu0 0
      %187 = vmatmul.mubr.bf16.gmra.mrb[0].mxu0 %v104
      %v188 = vpop.f32.mrb[0].mxu0
      %v189 = vadd.f32 0.0, %v188
      %v190 = vpop.f32.mrb[0].mxu0
      %v191 = vpop.f32.mrb[0].mxu0
      %v192 = vadd.f32 0.0, %v191
      %v193 = vpop.f32.mrb[0].mxu0
      %194 = vdwg.mxu0
      %v195 = vadd.f32 %v80, %v189
      %v196 = vadd.f32 %v81, %v192
      %197 = vst [vmem:[#allocation10] sm:$0xff] %v195
      %198 = vst [vmem:[#allocation10 + $0x8] sm:$0xff] %v196
    $region29: #{tpu_custom_call.1} parent=1 // pred_fallthru
      _
    // Predicated region
    $region30: #{tpu_custom_call.1} parent=1 // pred_check
      _
    $region31: #{tpu_custom_call.1} parent=1 // pred_check_branch
      %200 = sbr.rel (0) target = $region33
    $region32: #{tpu_custom_call.1} parent=1 // pred_region
      %s202 = ssub.s32 256, 256
      %203 = vsyncadd [#allocation7], %s202
      %s204 = sshll.u32 [#allocation10], 4
      %s205 = int_to_ptr.vmem [resolvable:$true] %s204
      %210 = dma.vmem_to_hbm [thread:$0]  %s205, 256, %s5, [#allocation7], 128, 128, 8
    $region33: #{tpu_custom_call.1} parent=1 // pred_fallthru
      _
    // Predicated region
    $region34: #{tpu_custom_call.1} parent=1 // pred_check
      _
    $region35: #{tpu_custom_call.1} parent=1 // pred_check_branch
      %212 = sbr.rel (0) target = $region37
    $region36: #{tpu_custom_call.1} parent=1 // pred_region
      %213 = dma.done [#allocation7], 256
    $region37: #{tpu_custom_call.1} parent=1 // pred_fallthru
      _
    %214 = vsyncpa [#allocation6], 1
    %215 = vsyncpa [#allocation9], 1
    %216 = vsyncpa [#allocation7], 1

</llo_original>
